<compile_context>
chip_gen: v5e
topology: v5e:2x2
jax: 0.10.0
libtpu: 0.0.40
codegen_flags: <defaults>
</compile_context>

<pallas_src>
import math

import jax
import jax.numpy as jnp
from jax.experimental import pallas as pl
from jax.experimental.pallas import tpu as pltpu

# ---------------- small synthetic shapes ----------------
B = 2           # batch size
P = 8           # prompt_len
H_SRC = 48      # hidden size of the source task prompt
H = 32          # target-model hidden size (== AE decoder out dim / P)
BOTTLE = 64     # AE bottleneck
S = 16          # total encoder sequence length (prompt occupies first P slots)
FFN = 64        # transformer FFN dim
VOCAB = 3072    # synthetic vocab size (>= class-token ids below)
SCORE_PAD = 128 # lane-dense width of the kernel's score output (cols 0..1 valid)
QKV_W = 3 * 128 # lane width of the padded fused-QKV weight / bias

# class-token vocab ids for data_name == 'rte' with model_base == 'bert'
RTE_TOKENS = (2053, 2748)

# rows of the packed bias / LayerNorm-vector array `vecs`
(VEC_BQKV, VEC_BO, VEC_G1, VEC_BE1, VEC_G2, VEC_BE2,
 VEC_BF1, VEC_BF2, VEC_LMB) = range(9)


# ================= fused Pallas kernel =================

def _ln(x, g, b, eps=1e-12):
    mu = jnp.mean(x, axis=-1, keepdims=True)
    var = jnp.mean((x - mu) ** 2, axis=-1, keepdims=True)
    return (x - mu) * jax.lax.rsqrt(var + eps) * g + b


def _fused_kernel(prompt_ref, emb_ref, bias_ref, w_qkv_ref, w_rest_ref,
                  vecs_ref, score_ref, x_scr):
    bf16, f32 = jnp.bfloat16, jnp.float32

    def mm(a, w):
        # bf16 MXU operands, f32 accumulation
        return jnp.dot(a.astype(bf16), w.astype(bf16), preferred_element_type=f32)

    def vec(row, width):
        # one packed bias / LN vector, shape (1, width), f32
        return vecs_ref[row:row + 1, 0:width]

    # ---- build encoder input x in VMEM scratch: dense embedding store, then
    #      replace_task_specific_prompt_emb via two aligned 8-row stores ----
    x_scr[...] = emb_ref[...].astype(f32)                    # (B*S, H)
    prompt_tgt = prompt_ref[...]                              # (P, H) f32 (AE output)
    for b in range(B):                                        # static offsets 0, S
        x_scr[b * S:b * S + P, :] = prompt_tgt
    x = x_scr[...]                                            # (B*S, H) f32
    xb = x.astype(bf16)

    # ---- fused Q|K|V projection: one MXU pass over the lane-padded weight.
    #      Each projection lives in its own 128-lane group (zero padded), so
    #      the slices below are vreg-aligned and the padding lanes stay 0. ----
    qkv = mm(xb, w_qkv_ref[...]) + vec(VEC_BQKV, QKV_W)       # (B*S, 384)
    q = qkv[:, 0:128]
    k = qkv[:, 128:256]
    v = qkv[:, 256:384]

    # ---- single block-diagonal attention over the flattened (B*S) axis ----
    s = jax.lax.dot_general(q.astype(bf16), k.astype(bf16),
                            (((1,), (1,)), ((), ())),
                            preferred_element_type=f32)       # (B*S, B*S)
    s = s * (1.0 / math.sqrt(H)) + bias_ref[...]              # key-pad + block mask
    s = s - jnp.max(s, axis=-1, keepdims=True)
    p = jnp.exp(s)
    p = p * pl.reciprocal(jnp.sum(p, axis=-1, keepdims=True), approx=True)
    ctx = mm(p, v)                                            # (B*S, 128); cols>=H are 0

    wo = w_rest_ref[0:H, 0:H]
    a = mm(ctx[:, 0:H], wo) + vec(VEC_BO, H)
    h1 = _ln(x + a, vec(VEC_G1, H), vec(VEC_BE1, H))          # f32 residual + LN

    # ---- FFN ----
    w1 = w_rest_ref[2 * H:3 * H, 0:FFN]
    w2 = w_rest_ref[3 * H:3 * H + FFN, 0:H]
    f = jnp.maximum(mm(h1, w1) + vec(VEC_BF1, FFN), 0.0)      # (B*S, FFN)
    f = mm(f, w2) + vec(VEC_BF2, H)                           # (B*S, H)
    hidden = _ln(h1 + f, vec(VEC_G2, H), vec(VEC_BE2, H))

    # ---- LM head (RTE class-token columns, lane-padded to 128) on all rows:
    #      same MXU cost as 2 rows at this size and keeps the output store
    #      fully dense; the wrapper selects rows {0, S}. ----
    lm_w = w_rest_ref[H:2 * H, :]
    score_ref[...] = mm(hidden, lm_w) + vec(VEC_LMB, SCORE_PAD)


def fused_cross_prompt(prompt_tgt, emb_flat, attn_bias, params):
    args = (prompt_tgt, emb_flat, attn_bias,
            params['w_qkv'], params['w_rest'], params['vecs'])

    def full_spec(a):
        nd = a.ndim
        return pl.BlockSpec(a.shape, lambda i, _nd=nd: (0,) * _nd)

    return pl.pallas_call(
        _fused_kernel,
        out_shape=jax.ShapeDtypeStruct((B * S, SCORE_PAD), jnp.float32),
        grid=(1,),
        in_specs=[full_spec(a) for a in args],
        out_specs=pl.BlockSpec((B * S, SCORE_PAD), lambda i: (0, 0)),
        scratch_shapes=[pltpu.VMEM((B * S, H), jnp.float32)],
        compiler_params=pltpu.CompilerParams(
            dimension_semantics=("arbitrary",)),
    )(*args)


# ================= parameters (packed for the kernel) =================

def init_params(key):
    ks = jax.random.split(key, 12)
    sd = 0.02

    def w32(k, shape):
        return (sd * jax.random.normal(k, shape)).astype(jnp.float32)

    # AE (kwargs['AE']): encoder (P*H_SRC -> BOTTLE), decoder (BOTTLE -> P*H)
    ae_we = w32(ks[1], (P * H_SRC, BOTTLE))
    ae_wd = w32(ks[2], (BOTTLE, P * H))

    # single transformer encoder layer (synthetic stand-in for the BERT layer)
    wq = w32(ks[5], (H, H))
    wk = w32(ks[6], (H, H))
    wv = w32(ks[7], (H, H))
    wo = w32(ks[8], (H, H))
    w1 = w32(ks[9], (H, FFN))
    w2 = w32(ks[10], (FFN, H))

    # LM head: only the 2 RTE class-token columns are ever read -> slice once
    # at init and zero-pad to 128 lanes for a lane-dense kernel output.
    lm_w_full = w32(ks[11], (H, VOCAB))
    lm_w = jnp.zeros((H, SCORE_PAD), jnp.float32)
    lm_w = lm_w.at[:, 0].set(lm_w_full[:, RTE_TOKENS[0]])
    lm_w = lm_w.at[:, 1].set(lm_w_full[:, RTE_TOKENS[1]])

    # ---- pack fused-QKV weight: each projection in its own 128-lane group ----
    w_qkv = jnp.zeros((H, QKV_W), jnp.float32)
    w_qkv = w_qkv.at[:, 0:H].set(wq)
    w_qkv = w_qkv.at[:, 128:128 + H].set(wk)
    w_qkv = w_qkv.at[:, 256:256 + H].set(wv)

    # ---- pack the remaining matmul weights into one sublane-stacked array ----
    w_rest = jnp.zeros((3 * H + FFN, 128), jnp.float32)
    w_rest = w_rest.at[0:H, 0:H].set(wo)
    w_rest = w_rest.at[H:2 * H, :].set(lm_w)
    w_rest = w_rest.at[2 * H:3 * H, 0:FFN].set(w1)
    w_rest = w_rest.at[3 * H:3 * H + FFN, 0:H].set(w2)

    # ---- pack every bias / LayerNorm vector into a single (16, 384) array ----
    vecs = jnp.zeros((16, QKV_W), jnp.float32)
    vecs = vecs.at[VEC_G1, 0:H].set(1.0)       # LN1 gamma
    vecs = vecs.at[VEC_G2, 0:H].set(1.0)       # LN2 gamma
    # all biases (qkv / o / ffn / lm) start at zero in this synthetic stand-in

    return {
        # stand-in for torch.load('task_prompt_emb/.../task_prompt')
        'task_prompt': w32(ks[0], (P, H_SRC)),
        # AE weights (used in the jit wrapper, not inside the kernel)
        'ae_we': ae_we, 'ae_be': jnp.zeros((1, BOTTLE), jnp.float32),
        'ae_wd': ae_wd, 'ae_bd': jnp.zeros((1, P * H), jnp.float32),
        # synthetic masked-LM embeddings
        # TODO(synk): original loads a pretrained Bert/RobertaForMaskedLM checkpoint;
        # replaced by a deterministic single-layer masked-LM stub with the same interface.
        'tok_emb': w32(ks[3], (VOCAB, H)),
        'pos_emb': w32(ks[4], (S, H)),
        # packed kernel weights
        'w_qkv': w_qkv.astype(jnp.bfloat16),
        'w_rest': w_rest.astype(jnp.bfloat16),
        'vecs': vecs,
    }


# ================= forward (glue) =================

@jax.jit
def cross_prompt_step(params, inputx, mask, label):
    # 1) task_specific_prompt_emb -> AE projection.  Every repeated batch row
    #    is identical, so the AE runs once on a single flattened row; it is
    #    two tiny matmuls fused by XLA inside this jit, right before the
    #    Pallas kernel.
    flat = params['task_prompt'].reshape(1, P * H_SRC)
    hbot = jax.nn.relu(flat @ params['ae_we'] + params['ae_be'])       # (1, BOTTLE)
    prompt_tgt = (hbot @ params['ae_wd'] + params['ae_bd']).reshape(P, H)

    # 2) masked-LM encoder input embeddings; pre-cast the large activation to bf16
    emb = jnp.take(params['tok_emb'], inputx, axis=0) + params['pos_emb'][None]
    emb_flat = emb.reshape(B * S, H).astype(jnp.bfloat16)

    # 3) additive attention bias for the block-diagonal pass:
    #    key padding within a batch row, -1e9 across different batch rows.
    same = jnp.equal(jnp.arange(B)[:, None, None, None],
                     jnp.arange(B)[None, None, :, None])               # (B,1,B,1)
    key_ok = (mask > 0)[None, None, :, :]                              # (1,1,B,S)
    allowed = jnp.broadcast_to(jnp.logical_and(same, key_ok), (B, S, B, S))
    attn_bias = jnp.where(allowed, 0.0, -1e9).reshape(B * S, B * S).astype(jnp.float32)

    # 4) fused prompt replacement -> encoder layer -> RTE LM-head columns
    score_pad = fused_cross_prompt(prompt_tgt, emb_flat, attn_bias, params)
    score = score_pad.reshape(B, S, SCORE_PAD)[:, 0, :len(RTE_TOKENS)]  # (B, 2)

    # 5) CrossEntropyLoss + accuracy (device-side scalars; jit-friendly)
    logp = score - jax.scipy.special.logsumexp(score, axis=1, keepdims=True)
    loss = -jnp.mean(logp[jnp.arange(B), label])
    predict = jnp.argmax(score, axis=1)
    right = jnp.sum((predict == label).astype(jnp.int32))
    return loss, score, right


def cross_prompt_forward(params, data, acc_result=None):
    loss, score, right = cross_prompt_step(params, data['inputx'],
                                           data['mask'], data['label'])
    if acc_result is None:
        acc_result = {'total': jnp.zeros((), jnp.int32),
                      'right': jnp.zeros((), jnp.int32)}
    # accumulate on device: no blocking device->host sync per step
    acc_result = {'total': acc_result['total'] + jnp.int32(data['label'].shape[0]),
                  'right': acc_result['right'] + right}
    return {'loss': loss, 'acc_result': acc_result, 'score': score}


# ================= driver =================

if __name__ == "__main__":
    key = jax.random.PRNGKey(0)
    pkey, ikey = jax.random.split(key)
    params = init_params(pkey)

    input_ids = jax.random.randint(ikey, (B, S), 0, VOCAB, dtype=jnp.int32)
    mask = jnp.ones((B, S), jnp.int32)
    mask = mask.at[1, S - 4:].set(0)          # pad out the tail of sample 1
    label = jnp.array([0, 1], dtype=jnp.int32)

    data = {'name': 'rte', 'inputx': input_ids, 'mask': mask, 'label': label}

    out = cross_prompt_forward(params, data)
    jax.block_until_ready(out['loss'])
    jax.block_until_ready(out['score'])
    assert out['score'].shape == (B, 2)
    # single host sync at the very end (not per step)
    assert int(out['acc_result']['total']) == B
    print("KERNEL_OK")
</pallas_src>

<mosaic_0001>
module attributes {stable_mosaic.version = 11 : i64} {
  func.func @_fused_kernel(%arg0: i32, %arg1: memref<8x32xf32, #tpu.memory_space<vmem>>, %arg2: memref<32x32xbf16, #tpu.memory_space<vmem>>, %arg3: memref<32x32xf32, #tpu.memory_space<vmem>>, %arg4: memref<32x384xbf16, #tpu.memory_space<vmem>>, %arg5: memref<160x128xbf16, #tpu.memory_space<vmem>>, %arg6: memref<16x384xf32, #tpu.memory_space<vmem>>, %arg7: memref<32x128xf32, #tpu.memory_space<vmem>>, %arg8: memref<32x32xf32, #tpu.memory_space<vmem>>) attributes {dimension_semantics = [#tpu.dimension_semantics<arbitrary>], iteration_bounds = array<i64: 1>, scalar_prefetch = 0 : i64, scratch_operands = 1 : i64, tpu.core_type = #tpu.core_type<tc>, window_params = [{pipeline_mode = #tpu.pipeline_mode<synchronous>, transform_indices = @transform_0, window_bounds = array<i64: 8, 32>}, {pipeline_mode = #tpu.pipeline_mode<synchronous>, transform_indices = @transform_1, window_bounds = array<i64: 32, 32>}, {pipeline_mode = #tpu.pipeline_mode<synchronous>, transform_indices = @transform_2, window_bounds = array<i64: 32, 32>}, {pipeline_mode = #tpu.pipeline_mode<synchronous>, transform_indices = @transform_3, window_bounds = array<i64: 32, 384>}, {pipeline_mode = #tpu.pipeline_mode<synchronous>, transform_indices = @transform_4, window_bounds = array<i64: 160, 128>}, {pipeline_mode = #tpu.pipeline_mode<synchronous>, transform_indices = @transform_5, window_bounds = array<i64: 16, 384>}, {pipeline_mode = #tpu.pipeline_mode<synchronous>, transform_indices = @transform_6, window_bounds = array<i64: 32, 128>}]} {
    %c0 = arith.constant 0 : index
    %c0_0 = arith.constant 0 : index
    %0 = vector.load %arg2[%c0, %c0_0] : memref<32x32xbf16, #tpu.memory_space<vmem>>, vector<32x32xbf16>
    %1 = arith.extf %0 : vector<32x32xbf16> to vector<32x32xf32>
    %c0_1 = arith.constant 0 : index
    %c0_2 = arith.constant 0 : index
    %2 = vector.load %arg8[%c0_1, %c0_2] : memref<32x32xf32, #tpu.memory_space<vmem>>, vector<32x32xf32>
    tpu.vector_store %arg8[%c0_1, %c0_2], %1 {strides = array<i32>} : memref<32x32xf32, #tpu.memory_space<vmem>>, vector<32x32xf32>,
    %c0_3 = arith.constant 0 : index
    %c0_4 = arith.constant 0 : index
    %3 = vector.load %arg1[%c0_3, %c0_4] : memref<8x32xf32, #tpu.memory_space<vmem>>, vector<8x32xf32>
    %c0_5 = arith.constant 0 : index
    %c0_6 = arith.constant 0 : index
    %4 = vector.load %arg8[%c0_5, %c0_6] : memref<32x32xf32, #tpu.memory_space<vmem>>, vector<8x32xf32>
    tpu.vector_store %arg8[%c0_5, %c0_6], %3 {strides = array<i32>} : memref<32x32xf32, #tpu.memory_space<vmem>>, vector<8x32xf32>,
    %c16 = arith.constant 16 : index
    %c0_7 = arith.constant 0 : index
    %5 = vector.load %arg8[%c16, %c0_7] : memref<32x32xf32, #tpu.memory_space<vmem>>, vector<8x32xf32>
    tpu.vector_store %arg8[%c16, %c0_7], %3 {strides = array<i32>} : memref<32x32xf32, #tpu.memory_space<vmem>>, vector<8x32xf32>,
    %c0_8 = arith.constant 0 : index
    %c0_9 = arith.constant 0 : index
    %6 = vector.load %arg8[%c0_8, %c0_9] : memref<32x32xf32, #tpu.memory_space<vmem>>, vector<32x32xf32>
    %7 = arith.truncf %6 : vector<32x32xf32> to vector<32x32xbf16>
    %c0_10 = arith.constant 0 : index
    %c0_11 = arith.constant 0 : index
    %8 = vector.load %arg4[%c0_10, %c0_11] : memref<32x384xbf16, #tpu.memory_space<vmem>>, vector<32x384xbf16>
    %cst = arith.constant dense<0.000000e+00> : vector<32x384xf32>
    %9 = tpu.matmul %7, %8, %cst {dimension_numbers = #tpu.dot_dimension_numbers<[1], [0], [0], [1], [0, 0, 1, 1], [], []>} : vector<32x32xbf16>, vector<32x384xbf16>, vector<32x384xf32> -> vector<32x384xf32>
    %c0_12 = arith.constant 0 : index
    %c0_13 = arith.constant 0 : index
    %10 = vector.load %arg6[%c0_12, %c0_13] : memref<16x384xf32, #tpu.memory_space<vmem>>, vector<1x384xf32>
    %11 = vector.broadcast %10 : vector<1x384xf32> to vector<32x384xf32>
    %12 = arith.addf %9, %11 : vector<32x384xf32>
    %13 = vector.extract_strided_slice %12 {offsets = [0, 0], sizes = [32, 128], strides = [1, 1]} : vector<32x384xf32> to vector<32x128xf32>
    %14 = vector.extract_strided_slice %12 {offsets = [0, 128], sizes = [32, 128], strides = [1, 1]} : vector<32x384xf32> to vector<32x128xf32>
    %15 = vector.extract_strided_slice %12 {offsets = [0, 256], sizes = [32, 128], strides = [1, 1]} : vector<32x384xf32> to vector<32x128xf32>
    %16 = arith.truncf %13 : vector<32x128xf32> to vector<32x128xbf16>
    %17 = arith.truncf %14 : vector<32x128xf32> to vector<32x128xbf16>
    %cst_14 = arith.constant dense<0.000000e+00> : vector<32x32xf32>
    %18 = tpu.matmul %16, %17, %cst_14 {dimension_numbers = #tpu.dot_dimension_numbers<[1], [1], [0], [0], [0, 0, 1, 0], [], []>} : vector<32x128xbf16>, vector<32x128xbf16>, vector<32x32xf32> -> vector<32x32xf32>
    %cst_15 = arith.constant 0.176776692 : f32
    %19 = vector.broadcast %cst_15 : f32 to vector<32x32xf32>
    %20 = arith.mulf %18, %19 : vector<32x32xf32>
    %c0_16 = arith.constant 0 : index
    %c0_17 = arith.constant 0 : index
    %21 = vector.load %arg3[%c0_16, %c0_17] : memref<32x32xf32, #tpu.memory_space<vmem>>, vector<32x32xf32>
    %22 = arith.addf %20, %21 : vector<32x32xf32>
    %cst_18 = arith.constant dense<0xFF800000> : vector<32xf32>
    %23 = vector.multi_reduction <maximumf>, %22, %cst_18 [1] : vector<32x32xf32> to vector<32xf32>
    %24 = vector.shape_cast %23 : vector<32xf32> to vector<32x1xf32>
    %25 = vector.broadcast %24 : vector<32x1xf32> to vector<32x32xf32>
    %26 = arith.subf %22, %25 : vector<32x32xf32>
    %27 = math.exp %26 : vector<32x32xf32>
    %cst_19 = arith.constant dense<0.000000e+00> : vector<32xf32>
    %28 = vector.multi_reduction <add>, %27, %cst_19 [1] : vector<32x32xf32> to vector<32xf32>
    %29 = vector.shape_cast %28 : vector<32xf32> to vector<32x1xf32>
    %30 = tpu.reciprocal %29 {approx = true} : vector<32x1xf32> -> vector<32x1xf32>
    %31 = vector.broadcast %30 : vector<32x1xf32> to vector<32x32xf32>
    %32 = arith.mulf %27, %31 : vector<32x32xf32>
    %33 = arith.truncf %32 : vector<32x32xf32> to vector<32x32xbf16>
    %34 = arith.truncf %15 : vector<32x128xf32> to vector<32x128xbf16>
    %cst_20 = arith.constant dense<0.000000e+00> : vector<32x128xf32>
    %35 = tpu.matmul %33, %34, %cst_20 {dimension_numbers = #tpu.dot_dimension_numbers<[1], [0], [0], [1], [0, 0, 1, 1], [], []>} : vector<32x32xbf16>, vector<32x128xbf16>, vector<32x128xf32> -> vector<32x128xf32>
    %c0_21 = arith.constant 0 : index
    %c0_22 = arith.constant 0 : index
    %36 = vector.load %arg5[%c0_21, %c0_22] : memref<160x128xbf16, #tpu.memory_space<vmem>>, vector<32x32xbf16>
    %37 = vector.extract_strided_slice %35 {offsets = [0, 0], sizes = [32, 32], strides = [1, 1]} : vector<32x128xf32> to vector<32x32xf32>
    %38 = arith.truncf %37 : vector<32x32xf32> to vector<32x32xbf16>
    %cst_23 = arith.constant dense<0.000000e+00> : vector<32x32xf32>
    %39 = tpu.matmul %38, %36, %cst_23 {dimension_numbers = #tpu.dot_dimension_numbers<[1], [0], [0], [1], [0, 0, 1, 1], [], []>} : vector<32x32xbf16>, vector<32x32xbf16>, vector<32x32xf32> -> vector<32x32xf32>
    %c1 = arith.constant 1 : index
    %c0_24 = arith.constant 0 : index
    %40 = vector.load %arg6[%c1, %c0_24] : memref<16x384xf32, #tpu.memory_space<vmem>>, vector<1x32xf32>
    %41 = vector.broadcast %40 : vector<1x32xf32> to vector<32x32xf32>
    %42 = arith.addf %39, %41 : vector<32x32xf32>
    %43 = arith.addf %6, %42 : vector<32x32xf32>
    %c2 = arith.constant 2 : index
    %c0_25 = arith.constant 0 : index
    %44 = vector.load %arg6[%c2, %c0_25] : memref<16x384xf32, #tpu.memory_space<vmem>>, vector<1x32xf32>
    %c3 = arith.constant 3 : index
    %c0_26 = arith.constant 0 : index
    %45 = vector.load %arg6[%c3, %c0_26] : memref<16x384xf32, #tpu.memory_space<vmem>>, vector<1x32xf32>
    %cst_27 = arith.constant dense<0.000000e+00> : vector<32xf32>
    %46 = vector.multi_reduction <add>, %43, %cst_27 [1] : vector<32x32xf32> to vector<32xf32>
    %47 = vector.shape_cast %46 : vector<32xf32> to vector<32x1xf32>
    %cst_28 = arith.constant 3.200000e+01 : f32
    %48 = vector.broadcast %cst_28 : f32 to vector<32x1xf32>
    %49 = arith.divf %47, %48 : vector<32x1xf32>
    %50 = vector.broadcast %49 : vector<32x1xf32> to vector<32x32xf32>
    %51 = arith.subf %43, %50 : vector<32x32xf32>
    %52 = arith.mulf %51, %51 : vector<32x32xf32>
    %cst_29 = arith.constant dense<0.000000e+00> : vector<32xf32>
    %53 = vector.multi_reduction <add>, %52, %cst_29 [1] : vector<32x32xf32> to vector<32xf32>
    %54 = vector.shape_cast %53 : vector<32xf32> to vector<32x1xf32>
    %cst_30 = arith.constant 3.200000e+01 : f32
    %55 = vector.broadcast %cst_30 : f32 to vector<32x1xf32>
    %56 = arith.divf %54, %55 : vector<32x1xf32>
    %57 = vector.broadcast %49 : vector<32x1xf32> to vector<32x32xf32>
    %58 = arith.subf %43, %57 : vector<32x32xf32>
    %cst_31 = arith.constant 9.99999996E-13 : f32
    %59 = vector.broadcast %cst_31 : f32 to vector<32x1xf32>
    %60 = arith.addf %56, %59 : vector<32x1xf32>
    %61 = math.rsqrt %60 : vector<32x1xf32>
    %62 = vector.broadcast %61 : vector<32x1xf32> to vector<32x32xf32>
    %63 = arith.mulf %58, %62 : vector<32x32xf32>
    %64 = vector.broadcast %44 : vector<1x32xf32> to vector<32x32xf32>
    %65 = arith.mulf %63, %64 : vector<32x32xf32>
    %66 = vector.broadcast %45 : vector<1x32xf32> to vector<32x32xf32>
    %67 = arith.addf %65, %66 : vector<32x32xf32>
    %c64 = arith.constant 64 : index
    %c0_32 = arith.constant 0 : index
    %68 = vector.load %arg5[%c64, %c0_32] : memref<160x128xbf16, #tpu.memory_space<vmem>>, vector<32x64xbf16>
    %c96 = arith.constant 96 : index
    %c0_33 = arith.constant 0 : index
    %69 = vector.load %arg5[%c96, %c0_33] : memref<160x128xbf16, #tpu.memory_space<vmem>>, vector<64x32xbf16>
    %70 = arith.truncf %67 : vector<32x32xf32> to vector<32x32xbf16>
    %cst_34 = arith.constant dense<0.000000e+00> : vector<32x64xf32>
    %71 = tpu.matmul %70, %68, %cst_34 {dimension_numbers = #tpu.dot_dimension_numbers<[1], [0], [0], [1], [0, 0, 1, 1], [], []>} : vector<32x32xbf16>, vector<32x64xbf16>, vector<32x64xf32> -> vector<32x64xf32>
    %c6 = arith.constant 6 : index
    %c0_35 = arith.constant 0 : index
    %72 = vector.load %arg6[%c6, %c0_35] : memref<16x384xf32, #tpu.memory_space<vmem>>, vector<1x64xf32>
    %73 = vector.broadcast %72 : vector<1x64xf32> to vector<32x64xf32>
    %74 = arith.addf %71, %73 : vector<32x64xf32>
    %cst_36 = arith.constant 0.000000e+00 : f32
    %75 = vector.broadcast %cst_36 : f32 to vector<32x64xf32>
    %76 = arith.maximumf %74, %75 : vector<32x64xf32>
    %77 = arith.truncf %76 : vector<32x64xf32> to vector<32x64xbf16>
    %cst_37 = arith.constant dense<0.000000e+00> : vector<32x32xf32>
    %78 = tpu.matmul %77, %69, %cst_37 {dimension_numbers = #tpu.dot_dimension_numbers<[1], [0], [0], [1], [0, 0, 1, 1], [], []>} : vector<32x64xbf16>, vector<64x32xbf16>, vector<32x32xf32> -> vector<32x32xf32>
    %c7 = arith.constant 7 : index
    %c0_38 = arith.constant 0 : index
    %79 = vector.load %arg6[%c7, %c0_38] : memref<16x384xf32, #tpu.memory_space<vmem>>, vector<1x32xf32>
    %80 = vector.broadcast %79 : vector<1x32xf32> to vector<32x32xf32>
    %81 = arith.addf %78, %80 : vector<32x32xf32>
    %82 = arith.addf %67, %81 : vector<32x32xf32>
    %c4 = arith.constant 4 : index
    %c0_39 = arith.constant 0 : index
    %83 = vector.load %arg6[%c4, %c0_39] : memref<16x384xf32, #tpu.memory_space<vmem>>, vector<1x32xf32>
    %c5 = arith.constant 5 : index
    %c0_40 = arith.constant 0 : index
    %84 = vector.load %arg6[%c5, %c0_40] : memref<16x384xf32, #tpu.memory_space<vmem>>, vector<1x32xf32>
    %cst_41 = arith.constant dense<0.000000e+00> : vector<32xf32>
    %85 = vector.multi_reduction <add>, %82, %cst_41 [1] : vector<32x32xf32> to vector<32xf32>
    %86 = vector.shape_cast %85 : vector<32xf32> to vector<32x1xf32>
    %cst_42 = arith.constant 3.200000e+01 : f32
    %87 = vector.broadcast %cst_42 : f32 to vector<32x1xf32>
    %88 = arith.divf %86, %87 : vector<32x1xf32>
    %89 = vector.broadcast %88 : vector<32x1xf32> to vector<32x32xf32>
    %90 = arith.subf %82, %89 : vector<32x32xf32>
    %91 = arith.mulf %90, %90 : vector<32x32xf32>
    %cst_43 = arith.constant dense<0.000000e+00> : vector<32xf32>
    %92 = vector.multi_reduction <add>, %91, %cst_43 [1] : vector<32x32xf32> to vector<32xf32>
    %93 = vector.shape_cast %92 : vector<32xf32> to vector<32x1xf32>
    %cst_44 = arith.constant 3.200000e+01 : f32
    %94 = vector.broadcast %cst_44 : f32 to vector<32x1xf32>
    %95 = arith.divf %93, %94 : vector<32x1xf32>
    %96 = vector.broadcast %88 : vector<32x1xf32> to vector<32x32xf32>
    %97 = arith.subf %82, %96 : vector<32x32xf32>
    %cst_45 = arith.constant 9.99999996E-13 : f32
    %98 = vector.broadcast %cst_45 : f32 to vector<32x1xf32>
    %99 = arith.addf %95, %98 : vector<32x1xf32>
    %100 = math.rsqrt %99 : vector<32x1xf32>
    %101 = vector.broadcast %100 : vector<32x1xf32> to vector<32x32xf32>
    %102 = arith.mulf %97, %101 : vector<32x32xf32>
    %103 = vector.broadcast %83 : vector<1x32xf32> to vector<32x32xf32>
    %104 = arith.mulf %102, %103 : vector<32x32xf32>
    %105 = vector.broadcast %84 : vector<1x32xf32> to vector<32x32xf32>
    %106 = arith.addf %104, %105 : vector<32x32xf32>
    %c32 = arith.constant 32 : index
    %c0_46 = arith.constant 0 : index
    %107 = vector.load %arg5[%c32, %c0_46] : memref<160x128xbf16, #tpu.memory_space<vmem>>, vector<32x128xbf16>
    %108 = arith.truncf %106 : vector<32x32xf32> to vector<32x32xbf16>
    %cst_47 = arith.constant dense<0.000000e+00> : vector<32x128xf32>
    %109 = tpu.matmul %108, %107, %cst_47 {dimension_numbers = #tpu.dot_dimension_numbers<[1], [0], [0], [1], [0, 0, 1, 1], [], []>} : vector<32x32xbf16>, vector<32x128xbf16>, vector<32x128xf32> -> vector<32x128xf32>
    %c8 = arith.constant 8 : index
    %c0_48 = arith.constant 0 : index
    %110 = vector.load %arg6[%c8, %c0_48] : memref<16x384xf32, #tpu.memory_space<vmem>>, vector<1x128xf32>
    %111 = vector.broadcast %110 : vector<1x128xf32> to vector<32x128xf32>
    %112 = arith.addf %109, %111 : vector<32x128xf32>
    %c0_49 = arith.constant 0 : index
    %c0_50 = arith.constant 0 : index
    %113 = vector.load %arg7[%c0_49, %c0_50] : memref<32x128xf32, #tpu.memory_space<vmem>>, vector<32x128xf32>
    tpu.vector_store %arg7[%c0_49, %c0_50], %112 {strides = array<i32>} : memref<32x128xf32, #tpu.memory_space<vmem>>, vector<32x128xf32>,
    return
  }
  func.func @transform_0(%arg0: i32) -> (i32, i32) {
    %c0_i32 = arith.constant 0 : i32
    %c0_i32_0 = arith.constant 0 : i32
    %c0_i32_1 = arith.constant 0 : i32
    return %c0_i32, %c0_i32_0 : i32, i32
  }
  func.func @transform_1(%arg0: i32) -> (i32, i32) {
    %c0_i32 = arith.constant 0 : i32
    %c0_i32_0 = arith.constant 0 : i32
    %c0_i32_1 = arith.constant 0 : i32
    return %c0_i32, %c0_i32_0 : i32, i32
  }
  func.func @transform_2(%arg0: i32) -> (i32, i32) {
    %c0_i32 = arith.constant 0 : i32
    %c0_i32_0 = arith.constant 0 : i32
    %c0_i32_1 = arith.constant 0 : i32
    return %c0_i32, %c0_i32_0 : i32, i32
  }
  func.func @transform_3(%arg0: i32) -> (i32, i32) {
    %c0_i32 = arith.constant 0 : i32
    %c0_i32_0 = arith.constant 0 : i32
    %c0_i32_1 = arith.constant 0 : i32
    return %c0_i32, %c0_i32_0 : i32, i32
  }
  func.func @transform_4(%arg0: i32) -> (i32, i32) {
    %c0_i32 = arith.constant 0 : i32
    %c0_i32_0 = arith.constant 0 : i32
    %c0_i32_1 = arith.constant 0 : i32
    return %c0_i32, %c0_i32_0 : i32, i32
  }
  func.func @transform_5(%arg0: i32) -> (i32, i32) {
    %c0_i32 = arith.constant 0 : i32
    %c0_i32_0 = arith.constant 0 : i32
    %c0_i32_1 = arith.constant 0 : i32
    return %c0_i32, %c0_i32_0 : i32, i32
  }
  func.func @transform_6(%arg0: i32) -> (i32, i32) {
    %c0_i32 = arith.constant 0 : i32
    %c0_i32_0 = arith.constant 0 : i32
    %c0_i32_1 = arith.constant 0 : i32
    return %c0_i32, %c0_i32_0 : i32, i32
  }
}

</mosaic_0001>

<llo_original>
// kernel: cross_prompt_step.1
$region0: #{cross_prompt_step.1}
  #allocation0 [shape = 'u32[]', space=smem, size = 0x4, offset = 0x4, fixed_abs, tag = 'smem constant byte address 0x4 - core index']
  #allocation1 [shape = 'u32[72,128]{1,0:T(1,128)}', space=vmem, size = 0x9000, scoped, tag = 'internal scratch']
  #allocation2 [shape = 'f32[32,32]{1,0:T(8,128)}', space=vmem, size = 0x4000, scoped, tag = 'scratch operand']
  %s0 = inlined_call_operand.vmem [shape: f32[8,32], index: 0, kind: input, shape index: {}]
  %s1 = inlined_call_operand.vmem [shape: bf16[32,32], index: 1, kind: input, shape index: {}]
  %s2 = inlined_call_operand.vmem [shape: f32[32,32], index: 2, kind: input, shape index: {}]
  %s3 = inlined_call_operand.vmem [shape: bf16[32,384], index: 3, kind: input, shape index: {}]
  %s4 = inlined_call_operand.vmem [shape: bf16[160,128], index: 4, kind: input, shape index: {}]
  %s5 = inlined_call_operand.vmem [shape: f32[16,384], index: 5, kind: input, shape index: {}]
  %s6 = inlined_call_operand.vmem [shape: f32[32,128], index: 6, kind: output, shape index: {}]
  %s7 = sld [smem:[#allocation0]]
  $region34: #{cross_prompt_step.1} parent=0
    _
  %s9 = ssub.s32 1, %s7
  %s10 = scalar_select 0, %s9, %s7
  // Predicated region
  $region2: #{cross_prompt_step.1} parent=0 // pred_check
    _
  $region3: #{cross_prompt_step.1} parent=0 // pred_check_branch
    %12 = sbr.rel (0) target = $region5
  $region4: #{cross_prompt_step.1} parent=0 // pred_region
    _
  $region5: #{cross_prompt_step.1} parent=0 // pred_fallthru
    _
  // Predicated region
  $region6: #{cross_prompt_step.1} parent=0 // pred_check
    _
  $region7: #{cross_prompt_step.1} parent=0 // pred_check_branch
    %14 = sbr.rel (0) target = $region9
  $region8: #{cross_prompt_step.1} parent=0 // pred_region
    _
  $region9: #{cross_prompt_step.1} parent=0 // pred_fallthru
    _
  // Predicated region
  $region10: #{cross_prompt_step.1} parent=0 // pred_check
    _
  $region11: #{cross_prompt_step.1} parent=0 // pred_check_branch
    %16 = sbr.rel (0) target = $region13
  $region12: #{cross_prompt_step.1} parent=0 // pred_region
    _
  $region13: #{cross_prompt_step.1} parent=0 // pred_fallthru
    _
  // Predicated region
  $region14: #{cross_prompt_step.1} parent=0 // pred_check
    _
  $region15: #{cross_prompt_step.1} parent=0 // pred_check_branch
    %18 = sbr.rel (0) target = $region17
  $region16: #{cross_prompt_step.1} parent=0 // pred_region
    _
  $region17: #{cross_prompt_step.1} parent=0 // pred_fallthru
    _
  // Predicated region
  $region18: #{cross_prompt_step.1} parent=0 // pred_check
    _
  $region19: #{cross_prompt_step.1} parent=0 // pred_check_branch
    %20 = sbr.rel (0) target = $region21
  $region20: #{cross_prompt_step.1} parent=0 // pred_region
    _
  $region21: #{cross_prompt_step.1} parent=0 // pred_fallthru
    _
  // Predicated region
  $region22: #{cross_prompt_step.1} parent=0 // pred_check
    _
  $region23: #{cross_prompt_step.1} parent=0 // pred_check_branch
    %22 = sbr.rel (0) target = $region25
  $region24: #{cross_prompt_step.1} parent=0 // pred_region
    _
  $region25: #{cross_prompt_step.1} parent=0 // pred_fallthru
    _
  %v24 = vld [vmem:[%s1] sm:$0xf]
  %v25 = vld [vmem:[%s1 + $0x4] sm:$0xf]
  %v26 = vld [vmem:[%s1 + $0x8] sm:$0xf]
  %v27 = vld [vmem:[%s1 + $0xc] sm:$0xf]
  %v28 = vunpack.c.l.bf16 %v24
  %v29 = vunpack.c.l.bf16 %v25
  %v30 = vunpack.c.l.bf16 %v26
  %v31 = vunpack.c.l.bf16 %v27
  %vm32 = vcmask 261120
  %33 = vst.msk [vmem:[#allocation2] sm:$0xff] %vm32, %v28
  %34 = vst.msk [vmem:[#allocation2 + $0x8] sm:$0xff] %vm32, %v29
  %35 = vst.msk [vmem:[#allocation2 + $0x10] sm:$0xff] %vm32, %v30
  %36 = vst.msk [vmem:[#allocation2 + $0x18] sm:$0xff] %vm32, %v31
  %v37 = vld [vmem:[%s0] sm:$0xff]
  %38 = vst.msk [vmem:[#allocation2] sm:$0xff] %vm32, %v37
  %39 = vst.msk [vmem:[#allocation2 + $0x10] sm:$0xff] %vm32, %v37
  %v40 = vld [vmem:[#allocation2] sm:$0xff]
  %v41 = vld [vmem:[#allocation2 + $0x8] sm:$0xff]
  %v42 = vld [vmem:[#allocation2 + $0x10] sm:$0xff]
  %v43 = vld [vmem:[#allocation2 + $0x18] sm:$0xff]
  %v44 = vpack.c.bf16 %v41, %v40
  %v45 = vpack.c.bf16 %v43, %v42
  %v46 = vld [vmem:[%s3] sm:$0xff]
  %v47 = vld [vmem:[%s3 + $0x8] sm:$0xf]
  %v48 = vld [vmem:[%s3 + $0xc] sm:$0xff]
  %v49 = vld [vmem:[%s3 + $0x14] sm:$0xf]
  %v50 = vld [vmem:[%s3 + $0x18] sm:$0xff]
  %v51 = vld [vmem:[%s3 + $0x20] sm:$0xf]
  %v52 = vld [vmem:[%s3 + $0x24] sm:$0xff]
  %v53 = vld [vmem:[%s3 + $0x2c] sm:$0xf]
  %v54 = vld [vmem:[%s5] ss:$8 sm:$0x7]
  %v56 = vperm.slane %v54, 0
  %v57 = vperm.slane %v54, 1
  %v58 = vperm.slane %v54, 2
  %v70 = vunpack.c.l.b16 %v46
  %v71 = vunpack.c.h.b16 %v46
  %v72 = vunpack.c.l.b16 %v47
  %v73 = vunpack.c.l.b16 %v48
  %v74 = vunpack.c.h.b16 %v48
  %v75 = vunpack.c.l.b16 %v49
  %v76 = vunpack.c.l.b16 %v50
  %v77 = vunpack.c.h.b16 %v50
  %v78 = vunpack.c.l.b16 %v51
  %v79 = vunpack.c.l.b16 %v52
  %v80 = vunpack.c.h.b16 %v52
  %v81 = vunpack.c.l.b16 %v53
  %v82 = vpack.c.b16 %v73, %v70
  %v83 = vpack.c.b16 %v74, %v71
  %v84 = vpack.c.b16 %v75, %v72
  %v85 = vpack.c.b16 %v79, %v76
  %v86 = vpack.c.b16 %v80, %v77
  %v87 = vpack.c.b16 %v81, %v78
  %v95 = vsel %vm32, %v44, 0
  %v98 = vsel %vm32, %v45, 0
  %100 = vmatpush.bf16.msra.mxu0 0
  %101 = vmatpush.bf16.msra.mxu0 0
  %102 = vmatpush.bf16.msra.mxu0 0
  %103 = vmatpush.bf16.msra.mxu0 0
  %104 = vmatpush.bf16.msra.mxu0 0
  %105 = vmatpush.bf16.msra.mxu0 0
  %106 = vmatpush.bf16.msra.mxu0 %v85
  %107 = vmatpush.bf16.msra.mxu0 %v82
  %108 = vmatmul.bf16.gmra.mxu0 %v95
  %v109 = vpop.f32.mrf.mxu0
  %v110 = vadd.f32 %v56, %v109
  %v111 = vpop.f32.mrf.mxu0
  %v112 = vadd.f32 %v56, %v111
  %113 = vmatmul.bf16.gmra.mxu0 %v98
  %v114 = vpop.f32.mrf.mxu0
  %v115 = vadd.f32 %v56, %v114
  %v116 = vpop.f32.mrf.mxu0
  %v117 = vadd.f32 %v56, %v116
  %118 = vdwg.mxu0
  %119 = vmatpush.bf16.msra.mxu0 0
  %120 = vmatpush.bf16.msra.mxu0 0
  %121 = vmatpush.bf16.msra.mxu0 0
  %122 = vmatpush.bf16.msra.mxu0 0
  %123 = vmatpush.bf16.msra.mxu0 0
  %124 = vmatpush.bf16.msra.mxu0 0
  %125 = vmatpush.bf16.msra.mxu0 %v86
  %126 = vmatpush.bf16.msra.mxu0 %v83
  %127 = vmatmul.bf16.gmra.mxu0 %v95
  %v128 = vpop.f32.mrf.mxu0
  %v129 = vadd.f32 %v57, %v128
  %v130 = vpop.f32.mrf.mxu0
  %v131 = vadd.f32 %v57, %v130
  %132 = vmatmul.bf16.gmra.mxu0 %v98
  %v133 = vpop.f32.mrf.mxu0
  %v134 = vadd.f32 %v57, %v133
  %v135 = vpop.f32.mrf.mxu0
  %v136 = vadd.f32 %v57, %v135
  %137 = vdwg.mxu0
  %138 = vmatpush.bf16.msra.mxu0 0
  %139 = vmatpush.bf16.msra.mxu0 0
  %140 = vmatpush.bf16.msra.mxu0 0
  %141 = vmatpush.bf16.msra.mxu0 0
  %142 = vmatpush.bf16.msra.mxu0 0
  %143 = vmatpush.bf16.msra.mxu0 0
  %144 = vmatpush.bf16.msra.mxu0 %v87
  %145 = vmatpush.bf16.msra.mxu0 %v84
  %146 = vmatmul.bf16.gmra.mxu0 %v95
  %v147 = vpop.f32.mrf.mxu0
  %v148 = vadd.f32 %v58, %v147
  %v149 = vpop.f32.mrf.mxu0
  %v150 = vadd.f32 %v58, %v149
  %151 = vmatmul.bf16.gmra.mxu0 %v98
  %v152 = vpop.f32.mrf.mxu0
  %v153 = vadd.f32 %v58, %v152
  %v154 = vpop.f32.mrf.mxu0
  %v155 = vadd.f32 %v58, %v154
  %156 = vdwg.mxu0
  %v157 = vpack.c.bf16 %v112, %v110
  %v158 = vpack.c.bf16 %v117, %v115
  %v159 = vpack.c.bf16 %v131, %v129
  %v160 = vpack.c.bf16 %v136, %v134
  %161 = vmatpush.bf16.xpose.msra.mxu0 0
  %162 = vmatpush.bf16.xpose.msra.mxu0 0
  %163 = vmatpush.bf16.xpose.msra.mxu0 0
  %164 = vmatpush.bf16.xpose.msra.mxu0 0
  %165 = vmatpush.bf16.xpose.msra.mxu0 0
  %166 = vmatpush.bf16.xpose.msra.mxu0 0
  %167 = vmatpush.bf16.xpose.msra.mxu0 %v160
  %168 = vmatpush.bf16.xpose.msra.mxu0 %v159
  %169 = vmatmul.bf16.gmra.mxu0 %v157
  %v170 = vpop.f32.mrf.mxu0
  %v171 = vadd.f32 0.0, %v170
  %v172 = vpop.f32.mrf.mxu0
  %v173 = vadd.f32 0.0, %v172
  %174 = vmatmul.bf16.gmra.mxu0 %v158
  %v175 = vpop.f32.mrf.mxu0
  %v176 = vadd.f32 0.0, %v175
  %v177 = vpop.f32.mrf.mxu0
  %v178 = vadd.f32 0.0, %v177
  %179 = vdwg.mxu0
  %v180 = vmul.f32 %v171, 0.17677669
  %v181 = vmul.f32 %v173, 0.17677669
  %v182 = vmul.f32 %v176, 0.17677669
  %v183 = vmul.f32 %v178, 0.17677669
  %v184 = vld [vmem:[%s2] sm:$0xff]
  %v185 = vld [vmem:[%s2 + $0x8] sm:$0xff]
  %v186 = vld [vmem:[%s2 + $0x10] sm:$0xff]
  %v187 = vld [vmem:[%s2 + $0x18] sm:$0xff]
  %v188 = vadd.f32 %v180, %v184
  %v189 = vadd.f32 %v181, %v185
  %v190 = vadd.f32 %v182, %v186
  %v191 = vadd.f32 %v183, %v187
  %v192 = vsel %vm32, %v188, -inf
  %193 = vmax.xlane.f32.xlu0 %v192
  %v194 = vpop.xlane.xlu0 %193
  %v195 = vsel %vm32, %v189, -inf
  %196 = vmax.xlane.f32.xlu0 %v195
  %v197 = vpop.xlane.xlu0 %196
  %v198 = vsel %vm32, %v190, -inf
  %199 = vmax.xlane.f32.xlu0 %v198
  %v200 = vpop.xlane.xlu0 %199
  %v201 = vsel %vm32, %v191, -inf
  %202 = vmax.xlane.f32.xlu0 %v201
  %v203 = vpop.xlane.xlu0 %202
  %v204 = vsub.f32 %v188, %v194
  %v205 = vsub.f32 %v189, %v197
  %v206 = vsub.f32 %v190, %v200
  %v207 = vsub.f32 %v191, %v203
  %v208 = vmul.f32 %v204, 1.442695
  %v209 = vpow.pop %v208
  %v210 = vmul.f32 %v205, 1.442695
  %v211 = vpow.pop %v210
  %v212 = vmul.f32 %v206, 1.442695
  %v213 = vpow.pop %v212
  %v214 = vmul.f32 %v207, 1.442695
  %v215 = vpow.pop %v214
  %v216 = vsel %vm32, %v209, 0.0
  %217 = vadd.xlane.f32.xlu0 %v216
  %v218 = vpop.xlane.xlu0 %217
  %v219 = vsel %vm32, %v211, 0.0
  %220 = vadd.xlane.f32.xlu0 %v219
  %v221 = vpop.xlane.xlu0 %220
  %v222 = vsel %vm32, %v213, 0.0
  %223 = vadd.xlane.f32.xlu0 %v222
  %v224 = vpop.xlane.xlu0 %223
  %v225 = vsel %vm32, %v215, 0.0
  %226 = vadd.xlane.f32.xlu0 %v225
  %v227 = vpop.xlane.xlu0 %226
  %v228 = vrcp.pop %v218
  %v229 = vrcp.pop %v221
  %v230 = vrcp.pop %v224
  %v231 = vrcp.pop %v227
  %v232 = vmul.f32 %v209, %v228
  %v233 = vmul.f32 %v211, %v229
  %v234 = vmul.f32 %v213, %v230
  %v235 = vmul.f32 %v215, %v231
  %v236 = vpack.c.bf16 %v233, %v232
  %v237 = vpack.c.bf16 %v235, %v234
  %v238 = vpack.c.bf16 %v150, %v148
  %v239 = vpack.c.bf16 %v155, %v153
  %v241 = vsel %vm32, %v236, 0
  %v244 = vsel %vm32, %v237, 0
  %246 = vmatpush.bf16.msra.mxu0 0
  %247 = vmatpush.bf16.msra.mxu0 0
  %248 = vmatpush.bf16.msra.mxu0 0
  %249 = vmatpush.bf16.msra.mxu0 0
  %250 = vmatpush.bf16.msra.mxu0 0
  %251 = vmatpush.bf16.msra.mxu0 0
  %252 = vmatpush.bf16.msra.mxu0 %v239
  %253 = vmatpush.bf16.msra.mxu0 %v238
  %254 = vmatmul.bf16.gmra.mxu0 %v241
  %v255 = vpop.f32.mrf.mxu0
  %v256 = vadd.f32 0.0, %v255
  %v257 = vpop.f32.mrf.mxu0
  %v258 = vadd.f32 0.0, %v257
  %259 = vmatmul.bf16.gmra.mxu0 %v244
  %v260 = vpop.f32.mrf.mxu0
  %v261 = vadd.f32 0.0, %v260
  %v262 = vpop.f32.mrf.mxu0
  %v263 = vadd.f32 0.0, %v262
  %264 = vdwg.mxu0
  %v265 = vld [vmem:[%s4] sm:$0xf]
  %v266 = vld [vmem:[%s4 + $0x4] sm:$0xf]
  %v267 = vld [vmem:[%s4 + $0x8] sm:$0xf]
  %v268 = vld [vmem:[%s4 + $0xc] sm:$0xf]
  %v269 = vpack.c.bf16 %v258, %v256
  %v270 = vpack.c.bf16 %v263, %v261
  %v271 = vld [vmem:[%s5 + $0x1] ss:$0 sm:$0xff]
  %v276 = vunpack.c.l.b16 %v265
  %v277 = vunpack.c.l.b16 %v266
  %v278 = vunpack.c.l.b16 %v267
  %v279 = vunpack.c.l.b16 %v268
  %v280 = vpack.c.b16 %v277, %v276
  %v281 = vpack.c.b16 %v279, %v278
  %v285 = vsel %vm32, %v269, 0
  %v288 = vsel %vm32, %v270, 0
  %290 = vmatpush.bf16.msra.mxu0 0
  %291 = vmatpush.bf16.msra.mxu0 0
  %292 = vmatpush.bf16.msra.mxu0 0
  %293 = vmatpush.bf16.msra.mxu0 0
  %294 = vmatpush.bf16.msra.mxu0 0
  %295 = vmatpush.bf16.msra.mxu0 0
  %296 = vmatpush.bf16.msra.mxu0 %v281
  %297 = vmatpush.bf16.msra.mxu0 %v280
  %298 = vmatmul.bf16.gmra.mxu0 %v285
  %v299 = vpop.f32.mrf.mxu0
  %v300 = vadd.f32 %v271, %v299
  %v301 = vpop.f32.mrf.mxu0
  %v302 = vadd.f32 %v271, %v301
  %303 = vmatmul.bf16.gmra.mxu0 %v288
  %v304 = vpop.f32.mrf.mxu0
  %v305 = vadd.f32 %v271, %v304
  %v306 = vpop.f32.mrf.mxu0
  %v307 = vadd.f32 %v271, %v306
  %308 = vdwg.mxu0
  %v309 = vadd.f32 %v40, %v300
  %v310 = vadd.f32 %v41, %v302
  %v311 = vadd.f32 %v42, %v305
  %v312 = vadd.f32 %v43, %v307
  %v313 = vld [vmem:[%s5 + $0x2] ss:$0 sm:$0xff]
  %v314 = vld [vmem:[%s5 + $0x3] ss:$0 sm:$0xff]
  %v315 = vsel %vm32, %v309, 0.0
  %316 = vadd.xlane.f32.xlu0 %v315
  %v317 = vpop.xlane.xlu0 %316
  %v318 = vsel %vm32, %v310, 0.0
  %319 = vadd.xlane.f32.xlu0 %v318
  %v320 = vpop.xlane.xlu0 %319
  %v321 = vsel %vm32, %v311, 0.0
  %322 = vadd.xlane.f32.xlu0 %v321
  %v323 = vpop.xlane.xlu0 %322
  %v324 = vsel %vm32, %v312, 0.0
  %325 = vadd.xlane.f32.xlu0 %v324
  %v326 = vpop.xlane.xlu0 %325
  %v327 = vrcp.pop 32.0
  %v328 = vmul.f32 32.0, %v327
  %v329 = vsub.f32 1.0, %v328
  %v330 = vmul.f32 %v327, %v329
  %v331 = vadd.f32 %v327, %v330
  %vm332 = vweird.f32 %v327
  %v333 = vsel %vm332, %v327, %v331
  %v334 = vmul.f32 %v317, %v333
  %v335 = vmul.f32 %v320, %v333
  %v336 = vmul.f32 %v323, %v333
  %v337 = vmul.f32 %v326, %v333
  %v338 = vsub.f32 %v309, %v334
  %v339 = vsub.f32 %v310, %v335
  %v340 = vsub.f32 %v311, %v336
  %v341 = vsub.f32 %v312, %v337
  %v342 = vmul.f32 %v338, %v338
  %v343 = vmul.f32 %v339, %v339
  %v344 = vmul.f32 %v340, %v340
  %v345 = vmul.f32 %v341, %v341
  %v346 = vsel %vm32, %v342, 0.0
  %347 = vadd.xlane.f32.xlu0 %v346
  %v348 = vpop.xlane.xlu0 %347
  %v349 = vsel %vm32, %v343, 0.0
  %350 = vadd.xlane.f32.xlu0 %v349
  %v351 = vpop.xlane.xlu0 %350
  %v352 = vsel %vm32, %v344, 0.0
  %353 = vadd.xlane.f32.xlu0 %v352
  %v354 = vpop.xlane.xlu0 %353
  %v355 = vsel %vm32, %v345, 0.0
  %356 = vadd.xlane.f32.xlu0 %v355
  %v357 = vpop.xlane.xlu0 %356
  %v358 = vmul.f32 %v348, %v333
  %v359 = vmul.f32 %v351, %v333
  %v360 = vmul.f32 %v354, %v333
  %v361 = vmul.f32 %v357, %v333
  %v362 = vadd.f32 %v358, 1e-12
  %v363 = vadd.f32 %v359, 1e-12
  %v364 = vadd.f32 %v360, 1e-12
  %v365 = vadd.f32 %v361, 1e-12
  %v366 = vrsqrt.pop %v362
  %v367 = vmul.f32 %v366, %v362
  %v368 = vmul.f32 %v367, %v366
  %v369 = vmul.f32 0.5, %v368
  %v370 = vsub.f32 1.5, %v369
  %v371 = vmul.f32 %v366, %v370
  %vm372 = vweird.f32 %v362
  %vm373 = vweird.f32 %v366
  %vm374 = vmor %vm372, %vm373
  %v375 = vsel %vm374, %v366, %v371
  %v376 = vrsqrt.pop %v363
  %v377 = vmul.f32 %v376, %v363
  %v378 = vmul.f32 %v377, %v376
  %v379 = vmul.f32 0.5, %v378
  %v380 = vsub.f32 1.5, %v379
  %v381 = vmul.f32 %v376, %v380
  %vm382 = vweird.f32 %v363
  %vm383 = vweird.f32 %v376
  %vm384 = vmor %vm382, %vm383
  %v385 = vsel %vm384, %v376, %v381
  %v386 = vrsqrt.pop %v364
  %v387 = vmul.f32 %v386, %v364
  %v388 = vmul.f32 %v387, %v386
  %v389 = vmul.f32 0.5, %v388
  %v390 = vsub.f32 1.5, %v389
  %v391 = vmul.f32 %v386, %v390
  %vm392 = vweird.f32 %v364
  %vm393 = vweird.f32 %v386
  %vm394 = vmor %vm392, %vm393
  %v395 = vsel %vm394, %v386, %v391
  %v396 = vrsqrt.pop %v365
  %v397 = vmul.f32 %v396, %v365
  %v398 = vmul.f32 %v397, %v396
  %v399 = vmul.f32 0.5, %v398
  %v400 = vsub.f32 1.5, %v399
  %v401 = vmul.f32 %v396, %v400
  %vm402 = vweird.f32 %v365
  %vm403 = vweird.f32 %v396
  %vm404 = vmor %vm402, %vm403
  %v405 = vsel %vm404, %v396, %v401
  %v406 = vmul.f32 %v338, %v375
  %v407 = vmul.f32 %v339, %v385
  %v408 = vmul.f32 %v340, %v395
  %v409 = vmul.f32 %v341, %v405
  %v410 = vmul.f32 %v406, %v313
  %v411 = vmul.f32 %v407, %v313
  %v412 = vmul.f32 %v408, %v313
  %v413 = vmul.f32 %v409, %v313
  %v414 = vadd.f32 %v410, %v314
  %v415 = vadd.f32 %v411, %v314
  %v416 = vadd.f32 %v412, %v314
  %v417 = vadd.f32 %v413, %v314
  %v418 = vld [vmem:[%s4 + $0x20] sm:$0xf]
  %v419 = vld [vmem:[%s4 + $0x24] sm:$0xf]
  %v420 = vld [vmem:[%s4 + $0x28] sm:$0xf]
  %v421 = vld [vmem:[%s4 + $0x2c] sm:$0xf]
  %v422 = vld [vmem:[%s4 + $0x30] sm:$0xf]
  %v423 = vld [vmem:[%s4 + $0x34] sm:$0xf]
  %v424 = vld [vmem:[%s4 + $0x38] sm:$0xf]
  %v425 = vld [vmem:[%s4 + $0x3c] sm:$0xf]
  %v426 = vld [vmem:[%s4 + $0x40] sm:$0xf]
  %v427 = vld [vmem:[%s4 + $0x44] sm:$0xf]
  %v428 = vld [vmem:[%s4 + $0x48] sm:$0xf]
  %v429 = vld [vmem:[%s4 + $0x4c] sm:$0xf]
  %v430 = vpack.c.bf16 %v415, %v414
  %v431 = vpack.c.bf16 %v417, %v416
  %v432 = vld [vmem:[%s5 + $0x6] ss:$0 sm:$0xff]
  %v437 = vunpack.c.l.b16 %v418
  %v438 = vunpack.c.l.b16 %v419
  %v439 = vunpack.c.l.b16 %v420
  %v440 = vunpack.c.l.b16 %v421
  %v441 = vpack.c.b16 %v438, %v437
  %v442 = vpack.c.b16 %v440, %v439
  %v446 = vsel %vm32, %v430, 0
  %v449 = vsel %vm32, %v431, 0
  %451 = vmatpush.bf16.msra.mxu0 0
  %452 = vmatpush.bf16.msra.mxu0 0
  %453 = vmatpush.bf16.msra.mxu0 0
  %454 = vmatpush.bf16.msra.mxu0 0
  %455 = vmatpush.bf16.msra.mxu0 0
  %456 = vmatpush.bf16.msra.mxu0 0
  %457 = vmatpush.bf16.msra.mxu0 %v442
  %458 = vmatpush.bf16.msra.mxu0 %v441
  %459 = vmatmul.bf16.gmra.mxu0 %v446
  %v460 = vpop.f32.mrf.mxu0
  %v461 = vadd.f32 %v432, %v460
  %v462 = vpop.f32.mrf.mxu0
  %v463 = vadd.f32 %v432, %v462
  %464 = vmatmul.bf16.gmra.mxu0 %v449
  %v465 = vpop.f32.mrf.mxu0
  %v466 = vadd.f32 %v432, %v465
  %v467 = vpop.f32.mrf.mxu0
  %v468 = vadd.f32 %v432, %v467
  %469 = vdwg.mxu0
  %v470 = vmax.f32 %v461, 0.0
  %v471 = vmax.f32 %v463, 0.0
  %v472 = vmax.f32 %v466, 0.0
  %v473 = vmax.f32 %v468, 0.0
  %v474 = vpack.c.bf16 %v471, %v470
  %v475 = vpack.c.bf16 %v473, %v472
  %v476 = vld [vmem:[%s5 + $0x7] ss:$0 sm:$0xff]
  %v485 = vunpack.c.l.b16 %v422
  %v486 = vunpack.c.l.b16 %v423
  %v487 = vunpack.c.l.b16 %v424
  %v488 = vunpack.c.l.b16 %v425
  %v489 = vunpack.c.l.b16 %v426
  %v490 = vunpack.c.l.b16 %v427
  %v491 = vunpack.c.l.b16 %v428
  %v492 = vunpack.c.l.b16 %v429
  %v493 = vpack.c.b16 %v486, %v485
  %v494 = vpack.c.b16 %v488, %v487
  %v495 = vpack.c.b16 %v490, %v489
  %v496 = vpack.c.b16 %v492, %v491
  %vm501 = vcmask 523264
  %v503 = vsel %vm501, %v474, 0
  %v506 = vsel %vm501, %v475, 0
  %508 = vmatpush.bf16.msra.mxu0 0
  %509 = vmatpush.bf16.msra.mxu0 0
  %510 = vmatpush.bf16.msra.mxu0 0
  %511 = vmatpush.bf16.msra.mxu0 0
  %512 = vmatpush.bf16.msra.mxu0 %v496
  %513 = vmatpush.bf16.msra.mxu0 %v495
  %514 = vmatpush.bf16.msra.mxu0 %v494
  %515 = vmatpush.bf16.msra.mxu0 %v493
  %516 = vmatmul.bf16.gmra.mxu0 %v503
  %v517 = vpop.f32.mrf.mxu0
  %v518 = vadd.f32 %v476, %v517
  %v519 = vpop.f32.mrf.mxu0
  %v520 = vadd.f32 %v476, %v519
  %521 = vmatmul.bf16.gmra.mxu0 %v506
  %v522 = vpop.f32.mrf.mxu0
  %v523 = vadd.f32 %v476, %v522
  %v524 = vpop.f32.mrf.mxu0
  %v525 = vadd.f32 %v476, %v524
  %526 = vdwg.mxu0
  %v527 = vadd.f32 %v414, %v518
  %v528 = vadd.f32 %v415, %v520
  %v529 = vadd.f32 %v416, %v523
  %v530 = vadd.f32 %v417, %v525
  %v531 = vld [vmem:[%s5 + $0x4] ss:$0 sm:$0xff]
  %v532 = vld [vmem:[%s5 + $0x5] ss:$0 sm:$0xff]
  %v533 = vsel %vm32, %v527, 0.0
  %534 = vadd.xlane.f32.xlu0 %v533
  %v535 = vpop.xlane.xlu0 %534
  %v536 = vsel %vm32, %v528, 0.0
  %537 = vadd.xlane.f32.xlu0 %v536
  %v538 = vpop.xlane.xlu0 %537
  %v539 = vsel %vm32, %v529, 0.0
  %540 = vadd.xlane.f32.xlu0 %v539
  %v541 = vpop.xlane.xlu0 %540
  %v542 = vsel %vm32, %v530, 0.0
  %543 = vadd.xlane.f32.xlu0 %v542
  %v544 = vpop.xlane.xlu0 %543
  %v545 = vmul.f32 %v535, %v333
  %v546 = vmul.f32 %v538, %v333
  %v547 = vmul.f32 %v541, %v333
  %v548 = vmul.f32 %v544, %v333
  %v549 = vsub.f32 %v527, %v545
  %v550 = vsub.f32 %v528, %v546
  %v551 = vsub.f32 %v529, %v547
  %v552 = vsub.f32 %v530, %v548
  %v553 = vmul.f32 %v549, %v549
  %v554 = vmul.f32 %v550, %v550
  %v555 = vmul.f32 %v551, %v551
  %v556 = vmul.f32 %v552, %v552
  %v557 = vsel %vm32, %v553, 0.0
  %558 = vadd.xlane.f32.xlu0 %v557
  %v559 = vpop.xlane.xlu0 %558
  %v560 = vsel %vm32, %v554, 0.0
  %561 = vadd.xlane.f32.xlu0 %v560
  %v562 = vpop.xlane.xlu0 %561
  %v563 = vsel %vm32, %v555, 0.0
  %564 = vadd.xlane.f32.xlu0 %v563
  %v565 = vpop.xlane.xlu0 %564
  %v566 = vsel %vm32, %v556, 0.0
  %567 = vadd.xlane.f32.xlu0 %v566
  %v568 = vpop.xlane.xlu0 %567
  %v569 = vmul.f32 %v559, %v333
  %v570 = vmul.f32 %v562, %v333
  %v571 = vmul.f32 %v565, %v333
  %v572 = vmul.f32 %v568, %v333
  %v573 = vadd.f32 %v569, 1e-12
  %v574 = vadd.f32 %v570, 1e-12
  %v575 = vadd.f32 %v571, 1e-12
  %v576 = vadd.f32 %v572, 1e-12
  %v577 = vrsqrt.pop %v573
  %v578 = vmul.f32 %v577, %v573
  %v579 = vmul.f32 %v578, %v577
  %v580 = vmul.f32 0.5, %v579
  %v581 = vsub.f32 1.5, %v580
  %v582 = vmul.f32 %v577, %v581
  %vm583 = vweird.f32 %v573
  %vm584 = vweird.f32 %v577
  %vm585 = vmor %vm583, %vm584
  %v586 = vsel %vm585, %v577, %v582
  %v587 = vrsqrt.pop %v574
  %v588 = vmul.f32 %v587, %v574
  %v589 = vmul.f32 %v588, %v587
  %v590 = vmul.f32 0.5, %v589
  %v591 = vsub.f32 1.5, %v590
  %v592 = vmul.f32 %v587, %v591
  %vm593 = vweird.f32 %v574
  %vm594 = vweird.f32 %v587
  %vm595 = vmor %vm593, %vm594
  %v596 = vsel %vm595, %v587, %v592
  %v597 = vrsqrt.pop %v575
  %v598 = vmul.f32 %v597, %v575
  %v599 = vmul.f32 %v598, %v597
  %v600 = vmul.f32 0.5, %v599
  %v601 = vsub.f32 1.5, %v600
  %v602 = vmul.f32 %v597, %v601
  %vm603 = vweird.f32 %v575
  %vm604 = vweird.f32 %v597
  %vm605 = vmor %vm603, %vm604
  %v606 = vsel %vm605, %v597, %v602
  %v607 = vrsqrt.pop %v576
  %v608 = vmul.f32 %v607, %v576
  %v609 = vmul.f32 %v608, %v607
  %v610 = vmul.f32 0.5, %v609
  %v611 = vsub.f32 1.5, %v610
  %v612 = vmul.f32 %v607, %v611
  %vm613 = vweird.f32 %v576
  %vm614 = vweird.f32 %v607
  %vm615 = vmor %vm613, %vm614
  %v616 = vsel %vm615, %v607, %v612
  %v617 = vmul.f32 %v549, %v586
  %v618 = vmul.f32 %v550, %v596
  %v619 = vmul.f32 %v551, %v606
  %v620 = vmul.f32 %v552, %v616
  %v621 = vmul.f32 %v617, %v531
  %v622 = vmul.f32 %v618, %v531
  %v623 = vmul.f32 %v619, %v531
  %v624 = vmul.f32 %v620, %v531
  %v625 = vadd.f32 %v621, %v532
  %v626 = vadd.f32 %v622, %v532
  %v627 = vadd.f32 %v623, %v532
  %v628 = vadd.f32 %v624, %v532
  %v629 = vld [vmem:[%s4 + $0x10] sm:$0xf]
  %v630 = vld [vmem:[%s4 + $0x14] sm:$0xf]
  %v631 = vld [vmem:[%s4 + $0x18] sm:$0xf]
  %v632 = vld [vmem:[%s4 + $0x1c] sm:$0xf]
  %v633 = vpack.c.bf16 %v626, %v625
  %v634 = vpack.c.bf16 %v628, %v627
  %v635 = vld [vmem:[%s5 + $0x18] ss:$0 sm:$0xff]
  %v640 = vunpack.c.l.b16 %v629
  %v641 = vunpack.c.l.b16 %v630
  %v642 = vunpack.c.l.b16 %v631
  %v643 = vunpack.c.l.b16 %v632
  %v644 = vpack.c.b16 %v641, %v640
  %v645 = vpack.c.b16 %v643, %v642
  %v649 = vsel %vm32, %v633, 0
  %v652 = vsel %vm32, %v634, 0
  %654 = vmatpush.bf16.msra.mxu0 0
  %655 = vmatpush.bf16.msra.mxu0 0
  %656 = vmatpush.bf16.msra.mxu0 0
  %657 = vmatpush.bf16.msra.mxu0 0
  %658 = vmatpush.bf16.msra.mxu0 0
  %659 = vmatpush.bf16.msra.mxu0 0
  %660 = vmatpush.bf16.msra.mxu0 %v645
  %661 = vmatpush.bf16.msra.mxu0 %v644
  %662 = vmatmul.bf16.gmra.mxu0 %v649
  %v663 = vpop.f32.mrf.mxu0
  %v664 = vadd.f32 %v635, %v663
  %v665 = vpop.f32.mrf.mxu0
  %v666 = vadd.f32 %v635, %v665
  %667 = vmatmul.bf16.gmra.mxu0 %v652
  %v668 = vpop.f32.mrf.mxu0
  %v669 = vadd.f32 %v635, %v668
  %v670 = vpop.f32.mrf.mxu0
  %v671 = vadd.f32 %v635, %v670
  %672 = vdwg.mxu0
  %673 = vst [vmem:[%s6] sm:$0xff] %v664
  %674 = vst [vmem:[%s6 + $0x8] sm:$0xff] %v666
  %675 = vst [vmem:[%s6 + $0x10] sm:$0xff] %v669
  %676 = vst [vmem:[%s6 + $0x18] sm:$0xff] %v671
  // Predicated region
  $region26: #{cross_prompt_step.1} parent=0 // pred_check
    _
  $region27: #{cross_prompt_step.1} parent=0 // pred_check_branch
    %678 = sbr.rel (0) target = $region29
  $region28: #{cross_prompt_step.1} parent=0 // pred_region
    _
  $region29: #{cross_prompt_step.1} parent=0 // pred_fallthru
    _
  // Predicated region
  $region30: #{cross_prompt_step.1} parent=0 // pred_check
    _
  $region31: #{cross_prompt_step.1} parent=0 // pred_check_branch
    %680 = sbr.rel (0) target = $region33
  $region32: #{cross_prompt_step.1} parent=0 // pred_region
    _
  $region33: #{cross_prompt_step.1} parent=0 // pred_fallthru
    _

</llo_original>
